<compile_context>
chip_gen: v7x
topology: tpu7x:2x2x1
jax: 0.10.0
libtpu: 0.0.40
codegen_flags: <defaults>
</compile_context>

<pallas_src>
import functools

import numpy as np
import jax
import jax.numpy as jnp
from jax.experimental import pallas as pl
from jax.experimental.pallas import tpu as pltpu


# ---------------------------------------------------------------------------
# helpers
# ---------------------------------------------------------------------------
def _round_up(x, m):
    return ((x + m - 1) // m) * m


def _fit_tile(dim, max_tile, align):
    """Tile (multiple of `align`, <= ~max_tile) keeping padding tight: the
    padded extent round_up(dim, tile) overshoots `dim` by < one block of
    slack instead of a hard threshold that can double the padded problem."""
    dim = max(int(dim), 1)
    aligned = _round_up(dim, align)
    if aligned <= max_tile:
        return aligned                       # single block, minimal padding
    n_blocks = pl.cdiv(dim, max_tile)
    return _round_up(pl.cdiv(dim, n_blocks), align)


def _vmem_limit_bytes(footprint):
    # Double-buffered footprint at the tile caps below is ~11 MiB, so 32 MiB
    # is ample on every generation; cap at 48 MiB which is still safe on v7x
    # (64 MiB physical VMEM).  v5e/v6e (128 MiB) simply get free headroom.
    return int(min(48 * 1024 * 1024, max(32 * 1024 * 1024, 2 * footprint)))


# ---------------------------------------------------------------------------
# Pallas kernels: tiled  y = x @ W + b
# ---------------------------------------------------------------------------
def _fused_linear_acc_kernel(x_ref, w_ref, b_ref, o_ref, acc_ref):
    """K-reduction grid axis with an f32 VMEM accumulator."""
    k = pl.program_id(2)

    @pl.when(k == 0)
    def _():
        acc_ref[...] = jnp.zeros_like(acc_ref)

    acc_ref[...] += jnp.dot(
        x_ref[...], w_ref[...], preferred_element_type=jnp.float32
    )

    @pl.when(k == pl.num_programs(2) - 1)
    def _():
        # Bias added once, on the final reduction step only.
        o_ref[...] = (acc_ref[...] + b_ref[...]).astype(o_ref.dtype)


def _fused_linear_1k_kernel(x_ref, w_ref, b_ref, o_ref):
    """F fits in a single K tile (common for classifier heads): no scratch
    accumulator, no pl.when phases — matmul + bias + store directly."""
    o_ref[...] = (
        jnp.dot(x_ref[...], w_ref[...], preferred_element_type=jnp.float32)
        + b_ref[...]
    ).astype(o_ref.dtype)


# ---------------------------------------------------------------------------
# jitted wrapper: cast/pad x -> pallas_call -> slice, all fused under jit
# ---------------------------------------------------------------------------
@functools.partial(
    jax.jit,
    static_argnames=("tm", "tk", "tn", "n_pad", "c_valid",
                     "compute_dtype", "out_dtype"),
)
def _fused_linear(x, w_p, b_p, *, tm, tk, tn, n_pad, c_valid,
                  compute_dtype, out_dtype):
    """Returns (x @ w_p + b_p)[:n, :c_valid].  w_p/b_p are pre-padded."""
    n, f = x.shape
    f_pad, c_pad = w_p.shape

    x_c = x.astype(compute_dtype)
    if (n_pad, f_pad) != (n, f):
        x_c = jnp.pad(x_c, ((0, n_pad - n), (0, f_pad - f)))

    grid_m = n_pad // tm
    grid_n = c_pad // tn
    grid_k = f_pad // tk

    isz_c = jnp.dtype(compute_dtype).itemsize
    isz_o = jnp.dtype(out_dtype).itemsize
    footprint = (2 * (tm * tk + tk * tn) * isz_c      # double-buffered x, W
                 + 2 * tm * tn * isz_o                # double-buffered out
                 + 2 * tn * 4                         # bias
                 + tm * tn * 4)                       # f32 accumulator
    cparams = pltpu.CompilerParams(
        dimension_semantics=(("parallel", "parallel", "arbitrary")
                             if grid_k > 1 else ("parallel", "parallel")),
        vmem_limit_bytes=_vmem_limit_bytes(footprint),
    )

    if grid_k == 1:
        out = pl.pallas_call(
            _fused_linear_1k_kernel,
            out_shape=jax.ShapeDtypeStruct((n_pad, c_pad), out_dtype),
            grid_spec=pltpu.PrefetchScalarGridSpec(
                num_scalar_prefetch=0,
                grid=(grid_m, grid_n),
                in_specs=[
                    pl.BlockSpec((tm, tk), lambda i, j: (i, 0)),
                    pl.BlockSpec((tk, tn), lambda i, j: (0, j)),
                    pl.BlockSpec((1, tn), lambda i, j: (0, j)),
                ],
                out_specs=pl.BlockSpec((tm, tn), lambda i, j: (i, j)),
            ),
            compiler_params=cparams,
        )(x_c, w_p, b_p)
    else:
        out = pl.pallas_call(
            _fused_linear_acc_kernel,
            out_shape=jax.ShapeDtypeStruct((n_pad, c_pad), out_dtype),
            grid_spec=pltpu.PrefetchScalarGridSpec(
                num_scalar_prefetch=0,
                grid=(grid_m, grid_n, grid_k),
                in_specs=[
                    pl.BlockSpec((tm, tk), lambda i, j, k: (i, k)),
                    pl.BlockSpec((tk, tn), lambda i, j, k: (k, j)),
                    pl.BlockSpec((1, tn), lambda i, j, k: (0, j)),
                ],
                out_specs=pl.BlockSpec((tm, tn), lambda i, j, k: (i, j)),
                scratch_shapes=[pltpu.VMEM((tm, tn), jnp.float32)],
            ),
            compiler_params=cparams,
        )(x_c, w_p, b_p)

    return out[:n, :c_valid]


# ---------------------------------------------------------------------------
# Module wrapper
# ---------------------------------------------------------------------------
class MaskedClassifiersPallas:
    """JAX/Pallas re-implementation of the MaskedClassifiers forward pass.

    All heads are fused into one (F, C_total) weight; per-head outputs are
    column slices of a single tiled matmul.  Padded / compute-dtype-cast
    parameters are built once here.  compute_dtype=jnp.bfloat16 uses the bf16
    MXU path (f32 accumulation) and helps on v5e, v6e and v7x alike.
    """

    # Tile caps: ~11 MiB double-buffered footprint worst case -> safe on the
    # smallest VMEM (v7x, 64 MiB physical).  tn cap keeps the 256-wide MXU
    # (v6e/v7x) fully fed whenever C_total >= 256.
    _TM_MAX = 512
    _TN_MAX = 512

    def __init__(self, n_features_in, n_classes_out, key, dtype=jnp.float32,
                 compute_dtype=None, dropout=0.5):
        self.n_features_in = int(n_features_in)
        self.n_classes_out = [int(c) for c in n_classes_out]
        self.dropout = dropout  # eval-mode identity
        self.param_dtype = jnp.dtype(dtype)
        self.compute_dtype = (jnp.dtype(compute_dtype)
                              if compute_dtype is not None else jnp.dtype(dtype))

        # nn.Linear default init range.
        bound = 1.0 / np.sqrt(self.n_features_in)
        self.weights, self.biases = [], []
        for n_c in self.n_classes_out:
            key, kw, kb = jax.random.split(key, 3)
            w = jax.random.uniform(kw, (self.n_features_in, n_c), dtype,
                                   minval=-bound, maxval=bound)
            b = jax.random.uniform(kb, (n_c,), dtype, minval=-bound, maxval=bound)
            self.weights.append(w)
            self.biases.append(b)

        # Fused parameters: one (F, C_total) weight, one (C_total,) bias.
        self.w_cat = jnp.concatenate(self.weights, axis=1)
        self.b_cat = jnp.concatenate(self.biases, axis=0)
        self.c_total = int(self.w_cat.shape[1])
        offs = np.cumsum([0] + self.n_classes_out)
        self.offsets = [(int(offs[i]), int(offs[i + 1]))
                        for i in range(len(self.n_classes_out))]

        # Tile sizes.  F (lane of x / sublane of W) and C (lane of W / out)
        # must be 128-aligned; M needs 16-row alignment for 16-bit compute
        # dtypes (packed sublanes), 8 otherwise.
        isz = self.compute_dtype.itemsize
        self._align_m = 16 if isz <= 2 else 8
        tk_max = 2048 if isz <= 2 else 1024
        self.tk = _fit_tile(self.n_features_in, tk_max, 128)
        self.tn = _fit_tile(self.c_total, self._TN_MAX, 128)
        self.f_pad = _round_up(self.n_features_in, self.tk)
        self.c_pad = _round_up(self.c_total, self.tn)

        # Pad + cast parameters ONCE (not per call).
        self.w_p = (jnp.zeros((self.f_pad, self.c_pad), self.compute_dtype)
                    .at[:self.n_features_in, :self.c_total]
                    .set(self.w_cat.astype(self.compute_dtype)))
        self.b_p = (jnp.zeros((1, self.c_pad), jnp.float32)
                    .at[0, :self.c_total]
                    .set(self.b_cat.astype(jnp.float32)))

    # -- fused matmul over the full batch -----------------------------------
    def _logits(self, x):
        n = int(x.shape[0])
        tm = _fit_tile(n, self._TM_MAX, self._align_m)
        n_pad = _round_up(n, tm)
        # If both parallel grid axes collapse to one block, split M so v7x's
        # second TensorCore is not idle (only when each half stays sizeable).
        if (n_pad // tm) == 1 and (self.c_pad // self.tn) == 1 and n >= 256:
            tm = _round_up(pl.cdiv(n, 2), self._align_m)
            n_pad = _round_up(n, tm)
        return _fused_linear(
            x, self.w_p, self.b_p,
            tm=tm, tk=self.tk, tn=self.tn, n_pad=n_pad,
            c_valid=self.c_total,
            compute_dtype=self.compute_dtype, out_dtype=jnp.dtype(x.dtype),
        )

    def __call__(self, x, mask):
        # Dropout (eval mode) == identity.
        # TODO(synk): training-mode stochastic dropout (torch RNG) not replicated.
        y = self._logits(x)

        if isinstance(mask, str) and mask == "all":
            return tuple(y[:, lo:hi] for (lo, hi) in self.offsets)

        # Integer-mask path: dynamic per-head row counts require one host read
        # of the (tiny) mask; the fused matmul already ran on device.
        mask_np = np.asarray(jax.device_get(mask))
        outs = []
        for i, (lo, hi) in enumerate(self.offsets):
            sel = np.nonzero(mask_np == i)[0]
            if sel.size == 0:
                outs.append(jnp.zeros((0, hi - lo), y.dtype))
            else:
                idx = jnp.asarray(sel, dtype=jnp.int32)
                # Slice columns BEFORE gathering rows (C_head << C_total).
                outs.append(jnp.take(y[:, lo:hi], idx, axis=0))
        return tuple(outs)


# ---------------------------------------------------------------------------
# Pure numpy reference (eval-mode dropout)
# ---------------------------------------------------------------------------
def _reference(x, weights, biases, mask):
    xs = np.asarray(jax.device_get(x)).astype(np.float32)
    ws = [np.asarray(w, np.float32) for w in weights]
    bs = [np.asarray(b, np.float32) for b in biases]
    if isinstance(mask, str) and mask == "all":
        return tuple(xs @ w + b for w, b in zip(ws, bs))
    mask_np = np.asarray(jax.device_get(mask))
    outs = []
    for i, (w, b) in enumerate(zip(ws, bs)):
        sel = np.nonzero(mask_np == i)[0]
        outs.append(xs[sel] @ w + b)
    return tuple(outs)


if __name__ == "__main__":
    key = jax.random.PRNGKey(0)
    key, kx, km, kp, kx2, kp2 = jax.random.split(key, 6)

    # --- small shapes consistent with the module -----------------------------
    batch = 8
    n_features_in = 32
    n_classes_out = [5, 7, 3]

    x = jax.random.normal(kx, (batch, n_features_in), dtype=jnp.float32)
    mask = jax.random.randint(km, (batch,), 0, len(n_classes_out), dtype=jnp.int32)

    model = MaskedClassifiersPallas(n_features_in, n_classes_out, kp)

    # mask == 'all' path (f32)
    out_all = jax.block_until_ready(model(x, "all"))
    ref_all = _reference(x, model.weights, model.biases, "all")
    for o, r in zip(out_all, ref_all):
        np.testing.assert_allclose(np.asarray(o), r, rtol=1e-5, atol=1e-5)

    # integer-mask path (f32)
    out_masked = jax.block_until_ready(model(x, mask))
    ref_masked = _reference(x, model.weights, model.biases, mask)
    for o, r in zip(out_masked, ref_masked):
        assert o.shape == r.shape
        if o.shape[0] > 0:
            np.testing.assert_allclose(np.asarray(o), r, rtol=1e-5, atol=1e-5)

    # --- medium shapes: tight-padding tiles + two-block M split --------------
    batch2, feat2 = 264, 640
    heads2 = [130, 50]
    x2 = jax.random.normal(kx2, (batch2, feat2), dtype=jnp.float32)
    model2 = MaskedClassifiersPallas(feat2, heads2, kp2)
    out2 = jax.block_until_ready(model2(x2, "all"))
    ref2 = _reference(x2, model2.weights, model2.biases, "all")
    for o, r in zip(out2, ref2):
        np.testing.assert_allclose(np.asarray(o), r, rtol=1e-4, atol=1e-4)

    # --- bf16 MXU path (v5e/v6e/v7x), f32 accumulation ------------------------
    model_bf16 = MaskedClassifiersPallas(
        n_features_in, n_classes_out, kp, compute_dtype=jnp.bfloat16
    )
    out_bf16 = jax.block_until_ready(model_bf16(x, "all"))
    ref_bf16 = _reference(x, model_bf16.weights, model_bf16.biases, "all")
    for o, r in zip(out_bf16, ref_bf16):
        np.testing.assert_allclose(np.asarray(o), r, rtol=5e-2, atol=5e-2)

    print("KERNEL_OK")
</pallas_src>

<mosaic_0001>
module attributes {stable_mosaic.version = 11 : i64} {
  func.func @_fused_linear_1k_kernel(%arg0: i32, %arg1: i32, %arg2: memref<8x128xf32, #tpu.memory_space<vmem>>, %arg3: memref<128x128xf32, #tpu.memory_space<vmem>>, %arg4: memref<1x128xf32, #tpu.memory_space<vmem>>, %arg5: memref<8x128xf32, #tpu.memory_space<vmem>>) attributes {dimension_semantics = [#tpu.dimension_semantics<parallel>, #tpu.dimension_semantics<parallel>], iteration_bounds = array<i64: 1, 1>, scalar_prefetch = 0 : i64, scratch_operands = 0 : i64, tpu.core_type = #tpu.core_type<tc>, window_params = [{transform_indices = @transform_0, window_bounds = array<i64: 8, 128>}, {transform_indices = @transform_1, window_bounds = array<i64: 128, 128>}, {transform_indices = @transform_2, window_bounds = array<i64: 1, 128>}, {transform_indices = @transform_3, window_bounds = array<i64: 8, 128>}]} {
    %c0 = arith.constant 0 : index
    %c0_0 = arith.constant 0 : index
    %0 = vector.load %arg2[%c0, %c0_0] : memref<8x128xf32, #tpu.memory_space<vmem>>, vector<8x128xf32>
    %c0_1 = arith.constant 0 : index
    %c0_2 = arith.constant 0 : index
    %1 = vector.load %arg3[%c0_1, %c0_2] : memref<128x128xf32, #tpu.memory_space<vmem>>, vector<128x128xf32>
    %cst = arith.constant dense<0.000000e+00> : vector<8x128xf32>
    %2 = tpu.matmul %0, %1, %cst {dimension_numbers = #tpu.dot_dimension_numbers<[1], [0], [0], [1], [0, 0, 1, 1], [], []>} : vector<8x128xf32>, vector<128x128xf32>, vector<8x128xf32> -> vector<8x128xf32>
    %c0_3 = arith.constant 0 : index
    %c0_4 = arith.constant 0 : index
    %3 = vector.load %arg4[%c0_3, %c0_4] : memref<1x128xf32, #tpu.memory_space<vmem>>, vector<1x128xf32>
    %4 = vector.broadcast %3 : vector<1x128xf32> to vector<8x128xf32>
    %5 = arith.addf %2, %4 : vector<8x128xf32>
    %c0_5 = arith.constant 0 : index
    %c0_6 = arith.constant 0 : index
    %6 = vector.load %arg5[%c0_5, %c0_6] : memref<8x128xf32, #tpu.memory_space<vmem>>, vector<8x128xf32>
    tpu.vector_store %arg5[%c0_5, %c0_6], %5 {strides = array<i32>} : memref<8x128xf32, #tpu.memory_space<vmem>>, vector<8x128xf32>,
    return
  }
  func.func @transform_0(%arg0: i32, %arg1: i32) -> (i32, i32) {
    %c0_i32 = arith.constant 0 : i32
    %c0_i32_0 = arith.constant 0 : i32
    return %arg0, %c0_i32 : i32, i32
  }
  func.func @transform_1(%arg0: i32, %arg1: i32) -> (i32, i32) {
    %c0_i32 = arith.constant 0 : i32
    %c0_i32_0 = arith.constant 0 : i32
    return %c0_i32, %arg1 : i32, i32
  }
  func.func @transform_2(%arg0: i32, %arg1: i32) -> (i32, i32) {
    %c0_i32 = arith.constant 0 : i32
    %c0_i32_0 = arith.constant 0 : i32
    return %c0_i32, %arg1 : i32, i32
  }
  func.func @transform_3(%arg0: i32, %arg1: i32) -> (i32, i32) {
    %c0_i32 = arith.constant 0 : i32
    return %arg0, %arg1 : i32, i32
  }
}

</mosaic_0001>

<llo_original>
// kernel: _fused_linear.1
$region0: #{_fused_linear.1}
  #allocation0 [shape = 'u32[]', space=smem, size = 0x4, offset = 0x4, fixed_abs, tag = 'smem constant byte address 0x4 - core index']
  #allocation1 [shape = 'u32[144,128]{1,0:T(1,128)}', space=vmem, size = 0x12000, scoped, tag = 'internal scratch']
  %s0 = inlined_call_operand.vmem [shape: f32[8,128], index: 0, kind: input, shape index: {}]
  %s1 = inlined_call_operand.hbm [shape: f32[128,128], index: 1, kind: input, shape index: {}]
  %s2 = inlined_call_operand.vmem [shape: f32[1,128], index: 2, kind: input, shape index: {}]
  %s3 = inlined_call_operand.hbm [shape: f32[8,128], index: 3, kind: output, shape index: {}]
  %s4 = sld [smem:[#allocation0]]
  $region26: #{_fused_linear.1} parent=0
    _
  %s6 = ssub.s32 1, %s4
  %s7 = scalar_select 0, %s6, %s4
  $region1: #{_fused_linear.1} parent=0
    #allocation2 [shape = 'u8[65536]{0}', space=vmem, size = 0x10000, scoped, tag = 'input window, operand 1, single buffered']
    #allocation3 [shape = 's32[1]{0}', space=sflag, size = 0x4, scoped, tag = 'scoped memory for _fused_linear.1']
    #allocation4 [shape = 's32[1]{0}', space=sflag, size = 0x4, scoped, tag = 'scoped memory for _fused_linear.1']
    #allocation5 [shape = 'u8[4096]{0}', space=vmem, size = 0x1000, scoped, tag = 'output window, operand 0, single buffered']
    %8 = vsyncpa [#allocation3], 0
    %9 = vsyncpa [#allocation4], 0
    // Predicated region
    $region2: #{_fused_linear.1} parent=1 // pred_check
      _
    $region3: #{_fused_linear.1} parent=1 // pred_check_branch
      %11 = sbr.rel (0) target = $region5
    $region4: #{_fused_linear.1} parent=1 // pred_region
      _
    $region5: #{_fused_linear.1} parent=1 // pred_fallthru
      _
    // Predicated region
    $region6: #{_fused_linear.1} parent=1 // pred_check
      _
    $region7: #{_fused_linear.1} parent=1 // pred_check_branch
      %13 = sbr.rel (0) target = $region9
    $region8: #{_fused_linear.1} parent=1 // pred_region
      %s15 = ssub.s32 2048, 2048
      %16 = vsyncadd [#allocation3], %s15
      %s17 = sshll.u32 [#allocation2], 4
      %s18 = int_to_ptr.vmem [resolvable:$true] %s17
      %23 = dma.hbm_to_vmem [thread:$0]  %s1, 2048, %s18, [#allocation3], 128, 128, 8
    $region9: #{_fused_linear.1} parent=1 // pred_fallthru
      _
    // Predicated region
    $region10: #{_fused_linear.1} parent=1 // pred_check
      _
    $region11: #{_fused_linear.1} parent=1 // pred_check_branch
      %25 = sbr.rel (0) target = $region13
    $region12: #{_fused_linear.1} parent=1 // pred_region
      _
    $region13: #{_fused_linear.1} parent=1 // pred_fallthru
      _
    // Predicated region
    $region14: #{_fused_linear.1} parent=1 // pred_check
      _
    $region15: #{_fused_linear.1} parent=1 // pred_check_branch
      %27 = sbr.rel (0) target = $region17
    $region16: #{_fused_linear.1} parent=1 // pred_region
      %28 = dma.done [#allocation3], 2048
    $region17: #{_fused_linear.1} parent=1 // pred_fallthru
      _
    %v29 = vld [vmem:[%s0] sm:$0xff]
    %v30 = vld [vmem:[#allocation2] sm:$0xff]
    %v31 = vld [vmem:[#allocation2 + $0x8] sm:$0xff]
    %v32 = vld [vmem:[#allocation2 + $0x10] sm:$0xff]
    %v33 = vld [vmem:[#allocation2 + $0x18] sm:$0xff]
    %v34 = vld [vmem:[#allocation2 + $0x20] sm:$0xff]
    %v35 = vld [vmem:[#allocation2 + $0x28] sm:$0xff]
    %v36 = vld [vmem:[#allocation2 + $0x30] sm:$0xff]
    %v37 = vld [vmem:[#allocation2 + $0x38] sm:$0xff]
    %v38 = vld [vmem:[#allocation2 + $0x40] sm:$0xff]
    %v39 = vld [vmem:[#allocation2 + $0x48] sm:$0xff]
    %v40 = vld [vmem:[#allocation2 + $0x50] sm:$0xff]
    %v41 = vld [vmem:[#allocation2 + $0x58] sm:$0xff]
    %v42 = vld [vmem:[#allocation2 + $0x60] sm:$0xff]
    %v43 = vld [vmem:[#allocation2 + $0x68] sm:$0xff]
    %v44 = vld [vmem:[#allocation2 + $0x70] sm:$0xff]
    %v45 = vld [vmem:[#allocation2 + $0x78] sm:$0xff]
    %v46 = vld [vmem:[%s2] sm:$0x1]
    %v48 = vlaneseq
    %v49 = vshrl.u32 %v48, 7
    %v50 = vsub.s32 0, %v49
    %v51 = vrot.slane %v46, %v50
    %53 = vmatprep.subr.mxu0 0.0
    %54 = vmatpush1.msra.mxu0 %v30
    %55 = vmatprep.subr.mxu0 0.0
    %56 = vmatpush1.msra.mxu0 %v31
    %57 = vmatprep.subr.mxu0 0.0
    %58 = vmatpush1.msra.mxu0 %v32
    %59 = vmatprep.subr.mxu0 0.0
    %60 = vmatpush1.msra.mxu0 %v33
    %61 = vmatprep.subr.mxu0 0.0
    %62 = vmatpush1.msra.mxu0 %v34
    %63 = vmatprep.subr.mxu0 0.0
    %64 = vmatpush1.msra.mxu0 %v35
    %65 = vmatprep.subr.mxu0 0.0
    %66 = vmatpush1.msra.mxu0 %v36
    %67 = vmatprep.subr.mxu0 0.0
    %68 = vmatpush1.msra.mxu0 %v37
    %69 = vmatprep.subr.mxu0 0.0
    %70 = vmatpush1.msra.mxu0 %v38
    %71 = vmatprep.subr.mxu0 0.0
    %72 = vmatpush1.msra.mxu0 %v39
    %73 = vmatprep.subr.mxu0 0.0
    %74 = vmatpush1.msra.mxu0 %v40
    %75 = vmatprep.subr.mxu0 0.0
    %76 = vmatpush1.msra.mxu0 %v41
    %77 = vmatprep.subr.mxu0 0.0
    %78 = vmatpush1.msra.mxu0 %v42
    %79 = vmatprep.subr.mxu0 0.0
    %80 = vmatpush1.msra.mxu0 %v43
    %81 = vmatprep.subr.mxu0 0.0
    %82 = vmatpush1.msra.mxu0 %v44
    %83 = vmatprep.subr.mxu0 0.0
    %84 = vmatpush1.msra.mxu0 %v45
    %85 = vmatprep.subr.mxu0 0.0
    %86 = vmatpush1.msra.mxu0 0.0
    %87 = vmatprep.subr.mxu0 0.0
    %88 = vmatpush1.msra.mxu0 0.0
    %89 = vmatprep.subr.mxu0 0.0
    %90 = vmatpush1.msra.mxu0 0.0
    %91 = vmatprep.subr.mxu0 0.0
    %92 = vmatpush1.msra.mxu0 0.0
    %93 = vmatprep.subr.mxu0 0.0
    %94 = vmatpush1.msra.mxu0 0.0
    %95 = vmatprep.subr.mxu0 0.0
    %96 = vmatpush1.msra.mxu0 0.0
    %97 = vmatprep.subr.mxu0 0.0
    %98 = vmatpush1.msra.mxu0 0.0
    %99 = vmatprep.subr.mxu0 0.0
    %100 = vmatpush1.msra.mxu0 0.0
    %101 = vmatprep.subr.mxu0 0.0
    %102 = vmatpush1.msra.mxu0 0.0
    %103 = vmatprep.subr.mxu0 0.0
    %104 = vmatpush1.msra.mxu0 0.0
    %105 = vmatprep.subr.mxu0 0.0
    %106 = vmatpush1.msra.mxu0 0.0
    %107 = vmatprep.subr.mxu0 0.0
    %108 = vmatpush1.msra.mxu0 0.0
    %109 = vmatprep.subr.mxu0 0.0
    %110 = vmatpush1.msra.mxu0 0.0
    %111 = vmatprep.subr.mxu0 0.0
    %112 = vmatpush1.msra.mxu0 0.0
    %113 = vmatprep.subr.mxu0 0.0
    %114 = vmatpush1.msra.mxu0 0.0
    %115 = vmatprep.subr.mxu0 0.0
    %116 = vmatpush1.msra.mxu0 0.0
    %117 = vmatprep.mubr.f32.mxu0 0.0
    %118 = vmatmul.mubr.f32.gmra.mrb[0].mxu0 %v29
    %v119 = vpop.f32.mrb[0].mxu0
    %v120 = vadd.f32 %v51, %v119
    %v121 = vpop.f32.mrb[0].mxu0
    %122 = vdwg.mxu0
    %123 = vst [vmem:[#allocation5] sm:$0xff] %v120
    // Predicated region
    $region18: #{_fused_linear.1} parent=1 // pred_check
      _
    $region19: #{_fused_linear.1} parent=1 // pred_check_branch
      %125 = sbr.rel (0) target = $region21
    $region20: #{_fused_linear.1} parent=1 // pred_region
      %s127 = ssub.s32 128, 128
      %128 = vsyncadd [#allocation4], %s127
      %s130 = sshll.u32 [#allocation5], 4
      %s131 = int_to_ptr.vmem [resolvable:$true] %s130
      %133 = dma.vmem_to_hbm [thread:$0]  %s131, 128, %s3, [#allocation4]
    $region21: #{_fused_linear.1} parent=1 // pred_fallthru
      _
    // Predicated region
    $region22: #{_fused_linear.1} parent=1 // pred_check
      _
    $region23: #{_fused_linear.1} parent=1 // pred_check_branch
      %135 = sbr.rel (0) target = $region25
    $region24: #{_fused_linear.1} parent=1 // pred_region
      %136 = dma.done [#allocation4], 128
    $region25: #{_fused_linear.1} parent=1 // pred_fallthru
      _
    %137 = vsyncpa [#allocation3], 1
    %138 = vsyncpa [#allocation4], 1

</llo_original>
